<compile_context>
chip_gen: v6e
topology: v6e:2x2x1
jax: 0.10.0
libtpu: 0.0.40
codegen_flags: <defaults>
</compile_context>

<pallas_src>
import math

import jax
import jax.numpy as jnp
from jax.experimental import pallas as pl
from jax.experimental.pallas import tpu as pltpu

_LANE = 128
_TARGET_BLOCK_BYTES = 4 * 1024 * 1024     # ~4 MiB streamed blocks
_VMEM_LIMIT_BYTES = 32 * 1024 * 1024      # headroom for 2-3 streams x 2 bufs


def _drop_path_kernel(x_ref, s_ref, o_ref):
    # x_ref: (TB, TL), s_ref: (TB, 1) per-sample scale (0 or 1/keep_prob).
    o_ref[...] = x_ref[...] * s_ref[...]


def _drop_path_residual_kernel(x_ref, r_ref, s_ref, o_ref):
    # Fused "residual + drop_path(branch)" — saves one HBM round trip.
    o_ref[...] = r_ref[...] + x_ref[...] * s_ref[...]


def _choose_tiles(B, L, itemsize):
    """Pick (TB, TL) block dims for the flattened (B, L) layout.

    Constraints: TL is a multiple of 128 or equals L; TB is a multiple of the
    dtype's sublane pack (8/16/32) or equals B.  Targets ~4 MiB per block so
    per-step overhead is amortized on v5e/v6e/v7x alike.
    """
    sub = {4: 8, 2: 16, 1: 32}.get(itemsize, 8)
    TB = B if B <= sub else sub

    if L <= _LANE:
        TL = L                                  # full trailing dim (legal)
    else:
        max_tl = (_TARGET_BLOCK_BYTES // (TB * itemsize)) // _LANE * _LANE
        max_tl = max(_LANE, max_tl)
        TL = L if max_tl >= L else max_tl       # full dim, or 128-multiple tile

    # If a whole sample fits, pack more samples per block up to the target.
    if TL == L and B > TB:
        rows_fit = _TARGET_BLOCK_BYTES // max(1, L * itemsize)
        if rows_fit >= B:
            TB = B
        else:
            TB = max(sub, (rows_fit // sub) * sub)
    return TB, TL


def drop_path(x, drop_prob: float = 0.0, training: bool = False, *,
              key=None, residual=None):
    """Stochastic Depth per sample (matches torch drop_path semantics).

    If `residual` is given, returns residual + drop_path(x) fused in one pass.
    """
    if drop_prob == 0.0 or not training:
        return x if residual is None else x + residual
    if not (0.0 <= drop_prob < 1.0):
        raise ValueError(f"drop_prob must be in [0, 1), got {drop_prob}")
    if key is None:
        raise ValueError("need a PRNG key when training with drop_prob > 0")

    keep_prob = 1.0 - drop_prob
    orig_shape = x.shape
    B = orig_shape[0]
    L = int(math.prod(orig_shape[1:]))

    # Per-sample keep decision (cheap glue in plain JAX), matching torch:
    # keep = floor(keep_prob + U[0,1)) in {0, 1}.
    u = jax.random.uniform(key, (B,), dtype=jnp.float32)
    keep = jnp.floor(keep_prob + u)
    scale = (keep / keep_prob).astype(x.dtype).reshape(B, 1)

    itemsize = jnp.dtype(x.dtype).itemsize
    TB, TL = _choose_tiles(B, L, itemsize)

    # Metadata-only reshapes: no padded HBM copy, no trailing slice.
    x2 = x.reshape(B, L)
    block_spec = pl.BlockSpec((TB, TL), lambda i, j: (i, j))
    scale_spec = pl.BlockSpec((TB, 1), lambda i, j: (i, 0))

    if residual is None:
        kernel = _drop_path_kernel
        args = (x2, scale)
        in_specs = [block_spec, scale_spec]
        n_stream = 2          # x read + out write
        flops = B * L
    else:
        kernel = _drop_path_residual_kernel
        args = (x2, residual.reshape(B, L), scale)
        in_specs = [block_spec, block_spec, scale_spec]
        n_stream = 3          # x read + residual read + out write
        flops = 2 * B * L

    cost = pl.CostEstimate(
        flops=flops,
        transcendentals=0,
        bytes_accessed=n_stream * B * L * itemsize + B * itemsize,
    )

    out2 = pl.pallas_call(
        kernel,
        out_shape=jax.ShapeDtypeStruct((B, L), x.dtype),
        grid=(pl.cdiv(B, TB), pl.cdiv(L, TL)),
        in_specs=in_specs,
        out_specs=pl.BlockSpec((TB, TL), lambda i, j: (i, j)),
        compiler_params=pltpu.CompilerParams(
            dimension_semantics=("parallel", "parallel"),
            vmem_limit_bytes=_VMEM_LIMIT_BYTES,
        ),
        cost_estimate=cost,
    )(*args)

    return out2.reshape(orig_shape)


class DropPath:
    """Stochastic Depth module (forward-only; no learned params)."""

    def __init__(self, drop_prob: float = 0.0):
        self.drop_prob = drop_prob
        self.training = True

    def __call__(self, x, *, key=None):
        return drop_path(x, self.drop_prob, self.training, key=key)


if __name__ == "__main__":
    root = jax.random.PRNGKey(0)
    kx1, km1, kx2, km2, kx3, km3, kr = jax.random.split(root, 7)

    # --- Case 1: conv-style 4-D f32 input, drop_prob = 0.5 ---
    x1 = jax.random.normal(kx1, (2, 4, 16, 16), dtype=jnp.float32)
    dp1 = 0.5
    mod = DropPath(dp1)
    out1 = jax.block_until_ready(mod(x1, key=km1))
    keep1 = jnp.floor((1.0 - dp1) + jax.random.uniform(km1, (2,), dtype=jnp.float32))
    ref1 = x1 * (keep1 / (1.0 - dp1))[:, None, None, None]
    assert jnp.allclose(out1, ref1, atol=1e-6, rtol=1e-6)

    # --- Case 2: bf16 ViT tokens with non-128-multiple per-sample length ---
    x2 = jax.random.normal(kx2, (4, 7, 48), dtype=jnp.bfloat16)
    dp2 = 0.25
    out2 = jax.block_until_ready(drop_path(x2, dp2, True, key=km2))
    keep2 = jnp.floor((1.0 - dp2) + jax.random.uniform(km2, (4,), dtype=jnp.float32))
    scale2 = (keep2 / (1.0 - dp2)).astype(jnp.bfloat16)
    ref2 = x2 * scale2[:, None, None]
    assert jnp.allclose(out2.astype(jnp.float32), ref2.astype(jnp.float32),
                        atol=1e-2, rtol=1e-2)

    # --- Case 3: fused residual + drop_path(branch), high drop rate ---
    x3 = jax.random.normal(kx3, (2, 8, 32), dtype=jnp.float32)
    r3 = jax.random.normal(kr, (2, 8, 32), dtype=jnp.float32)
    dp3 = 0.75
    out3 = jax.block_until_ready(drop_path(x3, dp3, True, key=km3, residual=r3))
    keep3 = jnp.floor((1.0 - dp3) + jax.random.uniform(km3, (2,), dtype=jnp.float32))
    ref3 = r3 + x3 * (keep3 / (1.0 - dp3))[:, None, None]
    assert jnp.allclose(out3, ref3, atol=1e-6, rtol=1e-6)

    # --- Eval / drop_prob == 0 path: identity ---
    mod_eval = DropPath(0.3)
    mod_eval.training = False
    out_eval = jax.block_until_ready(mod_eval(x1))
    assert jnp.allclose(out_eval, x1)

    print("KERNEL_OK")
</pallas_src>

<mosaic_0001>
module attributes {stable_mosaic.version = 11 : i64} {
  func.func @_drop_path_kernel(%arg0: i32, %arg1: i32, %arg2: memref<2x1024xf32, #tpu.memory_space<vmem>>, %arg3: memref<2x1xf32, #tpu.memory_space<vmem>>, %arg4: memref<2x1024xf32, #tpu.memory_space<vmem>>) attributes {dimension_semantics = [#tpu.dimension_semantics<parallel>, #tpu.dimension_semantics<parallel>], iteration_bounds = array<i64: 1, 1>, scalar_prefetch = 0 : i64, scratch_operands = 0 : i64, tpu.core_type = #tpu.core_type<tc>, window_params = [{transform_indices = @transform_0, window_bounds = array<i64: 2, 1024>}, {transform_indices = @transform_1, window_bounds = array<i64: 2, 1>}, {transform_indices = @transform_2, window_bounds = array<i64: 2, 1024>}]} {
    %c0 = arith.constant 0 : index
    %c0_0 = arith.constant 0 : index
    %0 = vector.load %arg2[%c0, %c0_0] : memref<2x1024xf32, #tpu.memory_space<vmem>>, vector<2x1024xf32>
    %c0_1 = arith.constant 0 : index
    %c0_2 = arith.constant 0 : index
    %1 = vector.load %arg3[%c0_1, %c0_2] : memref<2x1xf32, #tpu.memory_space<vmem>>, vector<2x1xf32>
    %2 = vector.broadcast %1 : vector<2x1xf32> to vector<2x1024xf32>
    %3 = arith.mulf %0, %2 : vector<2x1024xf32>
    %c0_3 = arith.constant 0 : index
    %c0_4 = arith.constant 0 : index
    %4 = vector.load %arg4[%c0_3, %c0_4] : memref<2x1024xf32, #tpu.memory_space<vmem>>, vector<2x1024xf32>
    tpu.vector_store %arg4[%c0_3, %c0_4], %3 {strides = array<i32>} : memref<2x1024xf32, #tpu.memory_space<vmem>>, vector<2x1024xf32>,
    return
  }
  func.func @transform_0(%arg0: i32, %arg1: i32) -> (i32, i32) {
    %c0_i32 = arith.constant 0 : i32
    return %arg0, %arg1 : i32, i32
  }
  func.func @transform_1(%arg0: i32, %arg1: i32) -> (i32, i32) {
    %c0_i32 = arith.constant 0 : i32
    %c0_i32_0 = arith.constant 0 : i32
    return %arg0, %c0_i32 : i32, i32
  }
  func.func @transform_2(%arg0: i32, %arg1: i32) -> (i32, i32) {
    %c0_i32 = arith.constant 0 : i32
    return %arg0, %arg1 : i32, i32
  }
}

</mosaic_0001>

<llo_original>
// kernel: tpu_custom_call.1
$region0: #{tpu_custom_call.1}
  #allocation0 [shape = 'u32[]', space=smem, size = 0x4, offset = 0x4, fixed_abs, tag = 'smem constant byte address 0x4 - core index']
  #allocation1 [shape = 'u32[144,128]{1,0:T(1,128)}', space=vmem, size = 0x12000, scoped, tag = 'internal scratch']
  %s0 = inlined_call_operand.hbm [shape: f32[2,1024], index: 0, kind: input, shape index: {}]
  %s1 = inlined_call_operand.vmem [shape: f32[2,1], index: 1, kind: input, shape index: {}]
  %s2 = inlined_call_operand.hbm [shape: f32[2,1024], index: 2, kind: output, shape index: {}]
  %s3 = sld [smem:[#allocation0]]
  $region22: #{tpu_custom_call.1} parent=0
    _
  %s5 = ssub.s32 1, %s3
  %s6 = scalar_select 0, %s5, %s3
  $region1: #{tpu_custom_call.1} parent=0
    #allocation2 [shape = 'u8[8192]{0}', space=vmem, size = 0x2000, scoped, tag = 'input window, operand 0, single buffered']
    #allocation3 [shape = 's32[1]{0}', space=sflag, size = 0x4, scoped, tag = 'scoped memory for tpu_custom_call.1']
    #allocation4 [shape = 's32[1]{0}', space=sflag, size = 0x4, scoped, tag = 'scoped memory for tpu_custom_call.1']
    #allocation5 [shape = 'u8[8192]{0}', space=vmem, size = 0x2000, scoped, tag = 'output window, operand 0, single buffered']
    %7 = vsyncpa [#allocation3], 0
    %8 = vsyncpa [#allocation4], 0
    // Predicated region
    $region2: #{tpu_custom_call.1} parent=1 // pred_check
      _
    $region3: #{tpu_custom_call.1} parent=1 // pred_check_branch
      %10 = sbr.rel (0) target = $region5
    $region4: #{tpu_custom_call.1} parent=1 // pred_region
      %s12 = ssub.s32 256, 256
      %13 = vsyncadd [#allocation3], %s12
      %s15 = sshll.u32 [#allocation2], 4
      %s16 = int_to_ptr.vmem [resolvable:$true] %s15
      %18 = dma.hbm_to_vmem [thread:$0]  %s0, 256, %s16, [#allocation3]
    $region5: #{tpu_custom_call.1} parent=1 // pred_fallthru
      _
    // Predicated region
    $region6: #{tpu_custom_call.1} parent=1 // pred_check
      _
    $region7: #{tpu_custom_call.1} parent=1 // pred_check_branch
      %20 = sbr.rel (0) target = $region9
    $region8: #{tpu_custom_call.1} parent=1 // pred_region
      _
    $region9: #{tpu_custom_call.1} parent=1 // pred_fallthru
      _
    // Predicated region
    $region10: #{tpu_custom_call.1} parent=1 // pred_check
      _
    $region11: #{tpu_custom_call.1} parent=1 // pred_check_branch
      %22 = sbr.rel (0) target = $region13
    $region12: #{tpu_custom_call.1} parent=1 // pred_region
      %23 = dma.done [#allocation3], 256
    $region13: #{tpu_custom_call.1} parent=1 // pred_fallthru
      _
    %v24 = vld [vmem:[#allocation2] sm:$0xff]
    %v25 = vld [vmem:[#allocation2 + $0x8] sm:$0xff]
    %v26 = vld [vmem:[%s1] sm:$0x3]
    %28 = vset.pattern.permute.xlu0 0
    %29 = vperm.xlu0 %28, %v26
    %v30 = vpop.permute.xlu0 %29
    %v32 = vunpack.c.l.s4 269488144
    %v33 = vunpack.c.0.s8 %v32
    %v34 = vlaneseq
    %v35 = vshrl.u32 %v34, 7
    %v36 = vsub.s32 %v33, %v35
    %v37 = vrot.slane %v30, %v36
    %v39 = vmul.f32 %v24, %v37
    %v40 = vmul.f32 %v25, %v37
    %41 = vst [vmem:[#allocation5] sm:$0xff] %v39
    %42 = vst [vmem:[#allocation5 + $0x8] sm:$0xff] %v40
    // Predicated region
    $region14: #{tpu_custom_call.1} parent=1 // pred_check
      _
    $region15: #{tpu_custom_call.1} parent=1 // pred_check_branch
      %44 = sbr.rel (0) target = $region17
    $region16: #{tpu_custom_call.1} parent=1 // pred_region
      %s46 = ssub.s32 256, 256
      %47 = vsyncadd [#allocation4], %s46
      %s49 = sshll.u32 [#allocation5], 4
      %s50 = int_to_ptr.vmem [resolvable:$true] %s49
      %52 = dma.vmem_to_hbm [thread:$0]  %s50, 256, %s2, [#allocation4]
    $region17: #{tpu_custom_call.1} parent=1 // pred_fallthru
      _
    // Predicated region
    $region18: #{tpu_custom_call.1} parent=1 // pred_check
      _
    $region19: #{tpu_custom_call.1} parent=1 // pred_check_branch
      %54 = sbr.rel (0) target = $region21
    $region20: #{tpu_custom_call.1} parent=1 // pred_region
      %55 = dma.done [#allocation4], 256
    $region21: #{tpu_custom_call.1} parent=1 // pred_fallthru
      _
    %56 = vsyncpa [#allocation3], 1
    %57 = vsyncpa [#allocation4], 1

</llo_original>
